<compile_context>
chip_gen: v5e
topology: v5e:2x2
jax: 0.10.0
libtpu: 0.0.40
codegen_flags: <defaults>
</compile_context>

<pallas_src>
import functools

import jax
import jax.numpy as jnp
from jax.experimental import pallas as pl
from jax.experimental.pallas import tpu as pltpu


# ----------------------------- Pallas kernel ------------------------------

def _fop_critic_kernel(obs_ref, act_ref, w1o_ref, w1a_ref, w2_ref, epi_ref,
                       q_ref):
    # obs_ref : [TM, D_obs]   (obs || one-hot agent id), f32 in HBM
    # act_ref : [TM, A]       f32
    # w1o_ref : [D_obs, H] bf16,  w1a_ref: [A, H] bf16,  w2_ref: [H, H] bf16
    # epi_ref : [4, H] f32  -- row 0 = b1, row 1 = b2, row 2 = w3 (fc3 weight
    #                          as a row), row 3 = b3 broadcast across H
    # q_ref   : [TM, 1] f32  (direct per-row store; no lane-broadcast slab)

    # bf16 operands for the MXU; f32 accumulation.
    xo = obs_ref[...].astype(jnp.bfloat16)
    xa = act_ref[...].astype(jnp.bfloat16)

    b1 = epi_ref[0:1, :]            # [1, H]
    b2 = epi_ref[1:2, :]            # [1, H]
    w3 = epi_ref[2:3, :]            # [1, H]
    b3 = epi_ref[3:4, 0:1]          # [1, 1]

    # fc1 on the split weight (no [obs || act] concat anywhere) + f32 bias/ReLU.
    h1 = (jnp.dot(xo, w1o_ref[...], preferred_element_type=jnp.float32)
          + jnp.dot(xa, w1a_ref[...], preferred_element_type=jnp.float32))
    h1 = jnp.maximum(h1 + b1, 0.0)

    # fc2.
    h2 = jnp.dot(h1.astype(jnp.bfloat16), w2_ref[...],
                 preferred_element_type=jnp.float32)
    h2 = jnp.maximum(h2 + b2, 0.0)

    # fc3 (N=1): VPU multiply + lane (XLU) reduction instead of a 1-wide MXU op.
    q = jnp.sum(h2 * w3, axis=-1, keepdims=True) + b3      # [TM, 1]
    q_ref[...] = q.astype(q_ref.dtype)


# --------------------------- parameter preparation -------------------------

def prepare_params(params, n_actions):
    """One-time preprocessing of FOPCritic params into kernel-ready operands.

    Hoisted out of the forward so the per-call path does no weight slicing,
    casting, or reshaping.
    """
    w1, b1, w2, b2, w3, b3 = params
    d_obs = w1.shape[0] - n_actions
    hidden = w1.shape[1]

    w1_obs = w1[:d_obs].astype(jnp.bfloat16)                 # [d_obs, H]
    w1_act = w1[d_obs:].astype(jnp.bfloat16)                 # [A, H]
    w2_bf = w2.astype(jnp.bfloat16)                          # [H, H]

    # Packed epilogue constants: [b1; b2; w3_row; b3*ones(H)] -> [4, H] f32.
    epi = jnp.stack(
        [
            b1.reshape(hidden).astype(jnp.float32),
            b2.reshape(hidden).astype(jnp.float32),
            w3.reshape(hidden).astype(jnp.float32),
            jnp.full((hidden,), jnp.float32(b3.reshape(()))),
        ],
        axis=0,
    )
    return (w1_obs, w1_act, w2_bf, epi)


# ------------------------------- wrapper -----------------------------------

def _round_up(n, m):
    return ((n + m - 1) // m) * m


def fop_critic_forward(inputs, actions, prepared_params, hidden_state=None):
    """Pallas implementation of FOPCritic.forward.

    inputs : [..., input_shape - n_actions]   (obs || one-hot agent id)
    actions: [..., n_actions]
    prepared_params: output of prepare_params().
    Returns (q, hidden_state) with q of shape [rows, 1].
    """
    w1_obs, w1_act, w2_bf, epi = prepared_params
    d_obs = w1_obs.shape[0]
    n_actions = w1_act.shape[0]
    hidden = w1_obs.shape[1]

    x_obs = inputs.reshape(-1, d_obs)        # no concat with actions needed
    x_act = actions.reshape(-1, n_actions)
    rows = x_obs.shape[0]

    # Row tile: big (4096) to amortize per-grid-step overhead -- the kernel is
    # HBM/step-overhead-bound, not VMEM-bound.  Tiny inputs get one exact
    # block (no partial-block path in the demo).
    TM = min(4096, _round_up(max(rows, 8), 8))
    n_tiles = pl.cdiv(rows, TM)

    q = pl.pallas_call(
        _fop_critic_kernel,
        out_shape=jax.ShapeDtypeStruct((rows, 1), jnp.float32),
        grid=(n_tiles,),
        in_specs=[
            pl.BlockSpec((TM, d_obs), lambda i: (i, 0)),          # obs tile
            pl.BlockSpec((TM, n_actions), lambda i: (i, 0)),      # act tile
            pl.BlockSpec((d_obs, hidden), lambda i: (0, 0)),      # W1_obs (resident)
            pl.BlockSpec((n_actions, hidden), lambda i: (0, 0)),  # W1_act (resident)
            pl.BlockSpec((hidden, hidden), lambda i: (0, 0)),     # W2     (resident)
            pl.BlockSpec((4, hidden), lambda i: (0, 0)),          # packed b1/b2/w3/b3
        ],
        out_specs=pl.BlockSpec((TM, 1), lambda i: (i, 0)),        # direct q store
        compiler_params=pltpu.CompilerParams(
            dimension_semantics=("parallel",),
            vmem_limit_bytes=48 << 20,
        ),
    )(x_obs, x_act, w1_obs, w1_act, w2_bf, epi)

    return q, hidden_state


# --------------------------- parameter creation ----------------------------

def init_params(key, input_shape, hidden_dim):
    """Deterministic init mimicking nn.Linear default (uniform +-1/sqrt(fan_in))."""
    ks = jax.random.split(key, 6)

    def lin(kw, kb, fan_in, fan_out):
        bound = 1.0 / jnp.sqrt(jnp.float32(fan_in))
        w = jax.random.uniform(kw, (fan_in, fan_out), jnp.float32, -bound, bound)
        b = jax.random.uniform(kb, (1, fan_out), jnp.float32, -bound, bound)
        return w, b

    w1, b1 = lin(ks[0], ks[1], input_shape, hidden_dim)
    w2, b2 = lin(ks[2], ks[3], hidden_dim, hidden_dim)
    w3, b3 = lin(ks[4], ks[5], hidden_dim, 1)
    return (w1, b1, w2, b2, w3, b3)


# --------------------------------- main ------------------------------------

if __name__ == "__main__":
    # Small, module-consistent shapes.
    bs, max_t = 2, 8
    n_agents = 4
    obs_shape = 16                      # args.obs_shape -> also n_actions
    hidden_dim = 32                     # args.rnn_hidden_dim

    n_actions = obs_shape
    input_shape = obs_shape + n_agents + n_actions   # _get_input_shape + n_actions

    key = jax.random.PRNGKey(0)
    k_obs, k_act, k_par = jax.random.split(key, 3)

    # _build_inputs: [obs || eye(n_agents)] -> (bs, max_t, n_agents, obs+n_agents)
    obs = jax.random.normal(k_obs, (bs, max_t, n_agents, obs_shape), jnp.float32)
    agent_ids = jnp.broadcast_to(
        jnp.eye(n_agents, dtype=jnp.float32)[None, None],
        (bs, max_t, n_agents, n_agents),
    )
    critic_inputs = jnp.concatenate([obs, agent_ids], axis=-1)

    actions = jax.random.normal(k_act, (bs, max_t, n_agents, n_actions),
                                jnp.float32)

    params = init_params(k_par, input_shape, hidden_dim)

    # One-time weight preprocessing (hoisted out of the per-call path),
    # jit-ted forward.
    prepped = prepare_params(params, n_actions)
    fwd = jax.jit(functools.partial(fop_critic_forward))

    q, hidden_state = fwd(critic_inputs, actions, prepped)
    q = jax.block_until_ready(q)

    # Reference with matching precision (bf16 operands, f32 accumulation),
    # built the "original" way (full concat + unsplit W1) to validate the
    # concat-elimination restructuring and the packed epilogue.
    w1, b1, w2, b2, w3, b3 = params
    x_ref = jnp.concatenate(
        [critic_inputs.reshape(-1, input_shape - n_actions),
         actions.reshape(-1, n_actions)], axis=-1)
    h = jnp.dot(x_ref.astype(jnp.bfloat16), w1.astype(jnp.bfloat16),
                preferred_element_type=jnp.float32)
    h = jnp.maximum(h + b1, 0.0)
    h = jnp.dot(h.astype(jnp.bfloat16), w2.astype(jnp.bfloat16),
                preferred_element_type=jnp.float32)
    h = jnp.maximum(h + b2, 0.0)
    q_ref = jnp.sum(h * w3.reshape(1, -1), axis=-1, keepdims=True) + b3

    rows = bs * max_t * n_agents
    assert q.shape == (rows, 1)
    assert hidden_state is None
    assert jnp.allclose(q, q_ref, atol=2e-3, rtol=2e-3)

    print("KERNEL_OK")
</pallas_src>

<mosaic_0001>
module attributes {stable_mosaic.version = 11 : i64} {
  func.func @_fop_critic_kernel(%arg0: i32, %arg1: memref<64x20xf32, #tpu.memory_space<vmem>>, %arg2: memref<64x16xf32, #tpu.memory_space<vmem>>, %arg3: memref<20x32xbf16, #tpu.memory_space<vmem>>, %arg4: memref<16x32xbf16, #tpu.memory_space<vmem>>, %arg5: memref<32x32xbf16, #tpu.memory_space<vmem>>, %arg6: memref<4x32xf32, #tpu.memory_space<vmem>>, %arg7: memref<64x1xf32, #tpu.memory_space<vmem>>) attributes {dimension_semantics = [#tpu.dimension_semantics<parallel>], iteration_bounds = array<i64: 1>, scalar_prefetch = 0 : i64, scratch_operands = 0 : i64, tpu.core_type = #tpu.core_type<tc>, window_params = [{transform_indices = @transform_0, window_bounds = array<i64: 64, 20>}, {transform_indices = @transform_1, window_bounds = array<i64: 64, 16>}, {pipeline_mode = #tpu.pipeline_mode<synchronous>, transform_indices = @transform_2, window_bounds = array<i64: 20, 32>}, {pipeline_mode = #tpu.pipeline_mode<synchronous>, transform_indices = @transform_3, window_bounds = array<i64: 16, 32>}, {pipeline_mode = #tpu.pipeline_mode<synchronous>, transform_indices = @transform_4, window_bounds = array<i64: 32, 32>}, {pipeline_mode = #tpu.pipeline_mode<synchronous>, transform_indices = @transform_5, window_bounds = array<i64: 4, 32>}, {transform_indices = @transform_6, window_bounds = array<i64: 64, 1>}]} {
    %c0 = arith.constant 0 : index
    %c0_0 = arith.constant 0 : index
    %0 = vector.load %arg1[%c0, %c0_0] : memref<64x20xf32, #tpu.memory_space<vmem>>, vector<64x20xf32>
    %1 = arith.truncf %0 : vector<64x20xf32> to vector<64x20xbf16>
    %c0_1 = arith.constant 0 : index
    %c0_2 = arith.constant 0 : index
    %2 = vector.load %arg2[%c0_1, %c0_2] : memref<64x16xf32, #tpu.memory_space<vmem>>, vector<64x16xf32>
    %3 = arith.truncf %2 : vector<64x16xf32> to vector<64x16xbf16>
    %c0_3 = arith.constant 0 : index
    %c0_4 = arith.constant 0 : index
    %4 = vector.load %arg6[%c0_3, %c0_4] : memref<4x32xf32, #tpu.memory_space<vmem>>, vector<1x32xf32>
    %c1 = arith.constant 1 : index
    %c0_5 = arith.constant 0 : index
    %5 = vector.load %arg6[%c1, %c0_5] : memref<4x32xf32, #tpu.memory_space<vmem>>, vector<1x32xf32>
    %c2 = arith.constant 2 : index
    %c0_6 = arith.constant 0 : index
    %6 = vector.load %arg6[%c2, %c0_6] : memref<4x32xf32, #tpu.memory_space<vmem>>, vector<1x32xf32>
    %c3 = arith.constant 3 : index
    %c0_7 = arith.constant 0 : index
    %7 = vector.load %arg6[%c3, %c0_7] : memref<4x32xf32, #tpu.memory_space<vmem>>, vector<1x1xf32>
    %c0_8 = arith.constant 0 : index
    %c0_9 = arith.constant 0 : index
    %8 = vector.load %arg3[%c0_8, %c0_9] : memref<20x32xbf16, #tpu.memory_space<vmem>>, vector<20x32xbf16>
    %cst = arith.constant dense<0.000000e+00> : vector<64x32xf32>
    %9 = tpu.matmul %1, %8, %cst {dimension_numbers = #tpu.dot_dimension_numbers<[1], [0], [0], [1], [0, 0, 1, 1], [], []>} : vector<64x20xbf16>, vector<20x32xbf16>, vector<64x32xf32> -> vector<64x32xf32>
    %c0_10 = arith.constant 0 : index
    %c0_11 = arith.constant 0 : index
    %10 = vector.load %arg4[%c0_10, %c0_11] : memref<16x32xbf16, #tpu.memory_space<vmem>>, vector<16x32xbf16>
    %cst_12 = arith.constant dense<0.000000e+00> : vector<64x32xf32>
    %11 = tpu.matmul %3, %10, %cst_12 {dimension_numbers = #tpu.dot_dimension_numbers<[1], [0], [0], [1], [0, 0, 1, 1], [], []>} : vector<64x16xbf16>, vector<16x32xbf16>, vector<64x32xf32> -> vector<64x32xf32>
    %12 = arith.addf %9, %11 : vector<64x32xf32>
    %13 = vector.broadcast %4 : vector<1x32xf32> to vector<64x32xf32>
    %14 = arith.addf %12, %13 : vector<64x32xf32>
    %cst_13 = arith.constant 0.000000e+00 : f32
    %15 = vector.broadcast %cst_13 : f32 to vector<64x32xf32>
    %16 = arith.maximumf %14, %15 : vector<64x32xf32>
    %17 = arith.truncf %16 : vector<64x32xf32> to vector<64x32xbf16>
    %c0_14 = arith.constant 0 : index
    %c0_15 = arith.constant 0 : index
    %18 = vector.load %arg5[%c0_14, %c0_15] : memref<32x32xbf16, #tpu.memory_space<vmem>>, vector<32x32xbf16>
    %cst_16 = arith.constant dense<0.000000e+00> : vector<64x32xf32>
    %19 = tpu.matmul %17, %18, %cst_16 {dimension_numbers = #tpu.dot_dimension_numbers<[1], [0], [0], [1], [0, 0, 1, 1], [], []>} : vector<64x32xbf16>, vector<32x32xbf16>, vector<64x32xf32> -> vector<64x32xf32>
    %20 = vector.broadcast %5 : vector<1x32xf32> to vector<64x32xf32>
    %21 = arith.addf %19, %20 : vector<64x32xf32>
    %cst_17 = arith.constant 0.000000e+00 : f32
    %22 = vector.broadcast %cst_17 : f32 to vector<64x32xf32>
    %23 = arith.maximumf %21, %22 : vector<64x32xf32>
    %24 = vector.broadcast %6 : vector<1x32xf32> to vector<64x32xf32>
    %25 = arith.mulf %23, %24 : vector<64x32xf32>
    %cst_18 = arith.constant dense<0.000000e+00> : vector<64xf32>
    %26 = vector.multi_reduction <add>, %25, %cst_18 [1] : vector<64x32xf32> to vector<64xf32>
    %27 = vector.shape_cast %26 : vector<64xf32> to vector<64x1xf32>
    %28 = vector.broadcast %7 : vector<1x1xf32> to vector<64x1xf32>
    %29 = arith.addf %27, %28 : vector<64x1xf32>
    %c0_19 = arith.constant 0 : index
    %c0_20 = arith.constant 0 : index
    %30 = vector.load %arg7[%c0_19, %c0_20] : memref<64x1xf32, #tpu.memory_space<vmem>>, vector<64x1xf32>
    tpu.vector_store %arg7[%c0_19, %c0_20], %29 {strides = array<i32>} : memref<64x1xf32, #tpu.memory_space<vmem>>, vector<64x1xf32>,
    return
  }
  func.func @transform_0(%arg0: i32) -> (i32, i32) {
    %c0_i32 = arith.constant 0 : i32
    %c0_i32_0 = arith.constant 0 : i32
    return %arg0, %c0_i32 : i32, i32
  }
  func.func @transform_1(%arg0: i32) -> (i32, i32) {
    %c0_i32 = arith.constant 0 : i32
    %c0_i32_0 = arith.constant 0 : i32
    return %arg0, %c0_i32 : i32, i32
  }
  func.func @transform_2(%arg0: i32) -> (i32, i32) {
    %c0_i32 = arith.constant 0 : i32
    %c0_i32_0 = arith.constant 0 : i32
    %c0_i32_1 = arith.constant 0 : i32
    return %c0_i32, %c0_i32_0 : i32, i32
  }
  func.func @transform_3(%arg0: i32) -> (i32, i32) {
    %c0_i32 = arith.constant 0 : i32
    %c0_i32_0 = arith.constant 0 : i32
    %c0_i32_1 = arith.constant 0 : i32
    return %c0_i32, %c0_i32_0 : i32, i32
  }
  func.func @transform_4(%arg0: i32) -> (i32, i32) {
    %c0_i32 = arith.constant 0 : i32
    %c0_i32_0 = arith.constant 0 : i32
    %c0_i32_1 = arith.constant 0 : i32
    return %c0_i32, %c0_i32_0 : i32, i32
  }
  func.func @transform_5(%arg0: i32) -> (i32, i32) {
    %c0_i32 = arith.constant 0 : i32
    %c0_i32_0 = arith.constant 0 : i32
    %c0_i32_1 = arith.constant 0 : i32
    return %c0_i32, %c0_i32_0 : i32, i32
  }
  func.func @transform_6(%arg0: i32) -> (i32, i32) {
    %c0_i32 = arith.constant 0 : i32
    %c0_i32_0 = arith.constant 0 : i32
    return %arg0, %c0_i32 : i32, i32
  }
}

</mosaic_0001>

<llo_original>
// kernel: fop_critic_forward.1
$region0: #{fop_critic_forward.1}
  #allocation0 [shape = 'u32[]', space=smem, size = 0x4, offset = 0x4, fixed_abs, tag = 'smem constant byte address 0x4 - core index']
  #allocation1 [shape = 'u32[72,128]{1,0:T(1,128)}', space=vmem, size = 0x9000, scoped, tag = 'internal scratch']
  %s0 = inlined_call_operand.hbm [shape: f32[64,20], index: 0, kind: input, shape index: {}]
  %s1 = inlined_call_operand.hbm [shape: f32[64,16], index: 1, kind: input, shape index: {}]
  %s2 = inlined_call_operand.hbm [shape: bf16[20,32], index: 2, kind: input, shape index: {}]
  %s3 = inlined_call_operand.hbm [shape: bf16[16,32], index: 3, kind: input, shape index: {}]
  %s4 = inlined_call_operand.hbm [shape: bf16[32,32], index: 4, kind: input, shape index: {}]
  %s5 = inlined_call_operand.vmem [shape: f32[4,32], index: 5, kind: input, shape index: {}]
  %s6 = inlined_call_operand.vmem [shape: f32[64,1], index: 6, kind: output, shape index: {}]
  %s7 = sld [smem:[#allocation0]]
  $region54: #{fop_critic_forward.1} parent=0
    _
  %s9 = ssub.s32 1, %s7
  %s10 = scalar_select 0, %s9, %s7
  $region1: #{fop_critic_forward.1} parent=0
    #allocation2 [shape = 'u8[32768]{0}', space=vmem, size = 0x8000, scoped, tag = 'input window, operand 0, single buffered']
    #allocation3 [shape = 's32[1]{0}', space=sflag, size = 0x4, scoped, tag = 'scoped memory for fop_critic_forward.1']
    #allocation4 [shape = 'u8[32768]{0}', space=vmem, size = 0x8000, scoped, tag = 'input window, operand 1, single buffered']
    #allocation5 [shape = 's32[1]{0}', space=sflag, size = 0x4, scoped, tag = 'scoped memory for fop_critic_forward.1']
    #allocation6 [shape = 'u8[6144]{0}', space=vmem, size = 0x1800, scoped, tag = 'input window, operand 2, single buffered']
    #allocation7 [shape = 'u8[4096]{0}', space=vmem, size = 0x1000, scoped, tag = 'input window, operand 3, single buffered']
    #allocation8 [shape = 's32[1]{0}', space=sflag, size = 0x4, scoped, tag = 'scoped memory for fop_critic_forward.1']
    #allocation9 [shape = 'u8[8192]{0}', space=vmem, size = 0x2000, scoped, tag = 'input window, operand 4, single buffered']
    %11 = vsyncpa [#allocation3], 0
    %12 = vsyncpa [#allocation5], 0
    %13 = vsyncpa [#allocation8], 0
    // Predicated region
    $region2: #{fop_critic_forward.1} parent=1 // pred_check
      _
    $region3: #{fop_critic_forward.1} parent=1 // pred_check_branch
      %15 = sbr.rel (0) target = $region5
    $region4: #{fop_critic_forward.1} parent=1 // pred_region
      %17 = vsyncadd [#allocation3], 0
      %s18 = sshll.u32 %s0, 4
      %s19 = int_to_ptr.hbm [resolvable:$true] %s18
      %s20 = sshll.u32 [#allocation2], 4
      %s21 = int_to_ptr.vmem [resolvable:$true] %s20
      %26 = dma.hbm_to_vmem [thread:$0]  %s19, 1024, %s21, [#allocation3], 128, 128, 8
    $region5: #{fop_critic_forward.1} parent=1 // pred_fallthru
      _
    // Predicated region
    $region6: #{fop_critic_forward.1} parent=1 // pred_check
      _
    $region7: #{fop_critic_forward.1} parent=1 // pred_check_branch
      %28 = sbr.rel (0) target = $region9
    $region8: #{fop_critic_forward.1} parent=1 // pred_region
      %30 = vsyncadd [#allocation5], 0
      %s31 = sshll.u32 %s1, 4
      %s32 = int_to_ptr.hbm [resolvable:$true] %s31
      %s33 = sshll.u32 [#allocation4], 4
      %s34 = int_to_ptr.vmem [resolvable:$true] %s33
      %39 = dma.hbm_to_vmem [thread:$0]  %s32, 1024, %s34, [#allocation5], 128, 128, 8
    $region9: #{fop_critic_forward.1} parent=1 // pred_fallthru
      _
    // Predicated region
    $region10: #{fop_critic_forward.1} parent=1 // pred_check
      _
    $region11: #{fop_critic_forward.1} parent=1 // pred_check_branch
      %41 = sbr.rel (0) target = $region13
    $region12: #{fop_critic_forward.1} parent=1 // pred_region
      %43 = vsyncadd [#allocation5], 0
      %s44 = sshll.u32 %s2, 4
      %s45 = int_to_ptr.hbm [resolvable:$true] %s44
      %s46 = sshll.u32 [#allocation6], 4
      %s47 = int_to_ptr.vmem [resolvable:$true] %s46
      %52 = dma.hbm_to_vmem [thread:$0]  %s45, 192, %s47, [#allocation5], 64, 64, 4
    $region13: #{fop_critic_forward.1} parent=1 // pred_fallthru
      _
    // Predicated region
    $region14: #{fop_critic_forward.1} parent=1 // pred_check
      _
    $region15: #{fop_critic_forward.1} parent=1 // pred_check_branch
      %54 = sbr.rel (0) target = $region17
    $region16: #{fop_critic_forward.1} parent=1 // pred_region
      %56 = vsyncadd [#allocation8], 0
      %s57 = sshll.u32 %s3, 4
      %s58 = int_to_ptr.hbm [resolvable:$true] %s57
      %s59 = sshll.u32 [#allocation7], 4
      %s60 = int_to_ptr.vmem [resolvable:$true] %s59
      %65 = dma.hbm_to_vmem [thread:$0]  %s58, 128, %s60, [#allocation8], 64, 64, 4
    $region17: #{fop_critic_forward.1} parent=1 // pred_fallthru
      _
    // Predicated region
    $region18: #{fop_critic_forward.1} parent=1 // pred_check
      _
    $region19: #{fop_critic_forward.1} parent=1 // pred_check_branch
      %67 = sbr.rel (0) target = $region21
    $region20: #{fop_critic_forward.1} parent=1 // pred_region
      %69 = vsyncadd [#allocation8], 0
      %s70 = sshll.u32 %s4, 4
      %s71 = int_to_ptr.hbm [resolvable:$true] %s70
      %s72 = sshll.u32 [#allocation9], 4
      %s73 = int_to_ptr.vmem [resolvable:$true] %s72
      %78 = dma.hbm_to_vmem [thread:$0]  %s71, 256, %s73, [#allocation8], 64, 64, 4
    $region21: #{fop_critic_forward.1} parent=1 // pred_fallthru
      _
    // Predicated region
    $region22: #{fop_critic_forward.1} parent=1 // pred_check
      _
    $region23: #{fop_critic_forward.1} parent=1 // pred_check_branch
      %80 = sbr.rel (0) target = $region25
    $region24: #{fop_critic_forward.1} parent=1 // pred_region
      _
    $region25: #{fop_critic_forward.1} parent=1 // pred_fallthru
      _
    // Predicated region
    $region26: #{fop_critic_forward.1} parent=1 // pred_check
      _
    $region27: #{fop_critic_forward.1} parent=1 // pred_check_branch
      %82 = sbr.rel (0) target = $region29
    $region28: #{fop_critic_forward.1} parent=1 // pred_region
      %84 = dma.done [#allocation3], 1024
    $region29: #{fop_critic_forward.1} parent=1 // pred_fallthru
      _
    // Predicated region
    $region30: #{fop_critic_forward.1} parent=1 // pred_check
      _
    $region31: #{fop_critic_forward.1} parent=1 // pred_check_branch
      %86 = sbr.rel (0) target = $region33
    $region32: #{fop_critic_forward.1} parent=1 // pred_region
      %88 = dma.done [#allocation5], 1024
    $region33: #{fop_critic_forward.1} parent=1 // pred_fallthru
      _
    // Predicated region
    $region34: #{fop_critic_forward.1} parent=1 // pred_check
      _
    $region35: #{fop_critic_forward.1} parent=1 // pred_check_branch
      %90 = sbr.rel (0) target = $region37
    $region36: #{fop_critic_forward.1} parent=1 // pred_region
      %92 = dma.done [#allocation5], 192
    $region37: #{fop_critic_forward.1} parent=1 // pred_fallthru
      _
    // Predicated region
    $region38: #{fop_critic_forward.1} parent=1 // pred_check
      _
    $region39: #{fop_critic_forward.1} parent=1 // pred_check_branch
      %94 = sbr.rel (0) target = $region41
    $region40: #{fop_critic_forward.1} parent=1 // pred_region
      %96 = dma.done [#allocation8], 128
    $region41: #{fop_critic_forward.1} parent=1 // pred_fallthru
      _
    // Predicated region
    $region42: #{fop_critic_forward.1} parent=1 // pred_check
      _
    $region43: #{fop_critic_forward.1} parent=1 // pred_check_branch
      %98 = sbr.rel (0) target = $region45
    $region44: #{fop_critic_forward.1} parent=1 // pred_region
      %100 = dma.done [#allocation8], 256
    $region45: #{fop_critic_forward.1} parent=1 // pred_fallthru
      _
    %v102 = vld [vmem:[#allocation2] sm:$0xff]
    %v103 = vld [vmem:[#allocation2 + $0x8] sm:$0xff]
    %v104 = vld [vmem:[#allocation2 + $0x10] sm:$0xff]
    %v105 = vld [vmem:[#allocation2 + $0x18] sm:$0xff]
    %v106 = vld [vmem:[#allocation2 + $0x20] sm:$0xff]
    %v107 = vld [vmem:[#allocation2 + $0x28] sm:$0xff]
    %v108 = vld [vmem:[#allocation2 + $0x30] sm:$0xff]
    %v109 = vld [vmem:[#allocation2 + $0x38] sm:$0xff]
    %v110 = vpack.c.bf16 %v103, %v102
    %v111 = vpack.c.bf16 %v105, %v104
    %v112 = vpack.c.bf16 %v107, %v106
    %v113 = vpack.c.bf16 %v109, %v108
    %v114 = vld [vmem:[#allocation4] sm:$0xff]
    %v115 = vld [vmem:[#allocation4 + $0x8] sm:$0xff]
    %v116 = vld [vmem:[#allocation4 + $0x10] sm:$0xff]
    %v117 = vld [vmem:[#allocation4 + $0x18] sm:$0xff]
    %v118 = vld [vmem:[#allocation4 + $0x20] sm:$0xff]
    %v119 = vld [vmem:[#allocation4 + $0x28] sm:$0xff]
    %v120 = vld [vmem:[#allocation4 + $0x30] sm:$0xff]
    %v121 = vld [vmem:[#allocation4 + $0x38] sm:$0xff]
    %v122 = vpack.c.bf16 %v115, %v114
    %v123 = vpack.c.bf16 %v117, %v116
    %v124 = vpack.c.bf16 %v119, %v118
    %v125 = vpack.c.bf16 %v121, %v120
    %v126 = vld [vmem:[%s5] sm:$0x1]
    %v127 = vld [vmem:[%s5 + $0x1] sm:$0x1]
    %v128 = vld [vmem:[%s5 + $0x2] sm:$0x1]
    %v129 = vld [vmem:[%s5 + $0x3] sm:$0x1]
    %v130 = vld [vmem:[#allocation6] sm:$0xf]
    %v131 = vld [vmem:[#allocation6 + $0x4] sm:$0xf]
    %v132 = vld [vmem:[#allocation6 + $0x8] sm:$0x3]
    %v133 = vld [vmem:[#allocation7] sm:$0xf]
    %v134 = vld [vmem:[#allocation7 + $0x4] sm:$0xf]
    %v137 = vunpack.c.l.b16 %v133
    %v138 = vunpack.c.l.b16 %v134
    %v139 = vpack.c.b16 %v138, %v137
    %vm141 = vcmask 130048
    %v143 = vsel %vm141, %v122, 0
    %v146 = vsel %vm141, %v123, 0
    %v149 = vsel %vm141, %v124, 0
    %v152 = vsel %vm141, %v125, 0
    %154 = vmatpush.bf16.msra.mxu0 0
    %155 = vmatpush.bf16.msra.mxu0 0
    %156 = vmatpush.bf16.msra.mxu0 0
    %157 = vmatpush.bf16.msra.mxu0 0
    %158 = vmatpush.bf16.msra.mxu0 0
    %159 = vmatpush.bf16.msra.mxu0 0
    %160 = vmatpush.bf16.msra.mxu0 0
    %161 = vmatpush.bf16.msra.mxu0 %v139
    %162 = vmatmul.bf16.gmra.mxu0 %v143
    %v163 = vpop.f32.mrf.mxu0
    %v164 = vadd.f32 0.0, %v163
    %v165 = vpop.f32.mrf.mxu0
    %v166 = vadd.f32 0.0, %v165
    %167 = vmatmul.bf16.gmra.mxu0 %v146
    %v168 = vpop.f32.mrf.mxu0
    %v169 = vadd.f32 0.0, %v168
    %v170 = vpop.f32.mrf.mxu0
    %v171 = vadd.f32 0.0, %v170
    %172 = vmatmul.bf16.gmra.mxu0 %v149
    %v173 = vpop.f32.mrf.mxu0
    %v174 = vadd.f32 0.0, %v173
    %v175 = vpop.f32.mrf.mxu0
    %v176 = vadd.f32 0.0, %v175
    %177 = vmatmul.bf16.gmra.mxu0 %v152
    %v178 = vpop.f32.mrf.mxu0
    %v179 = vadd.f32 0.0, %v178
    %v180 = vpop.f32.mrf.mxu0
    %v181 = vadd.f32 0.0, %v180
    %182 = vdwg.mxu0
    %v186 = vunpack.c.l.b16 %v130
    %v187 = vunpack.c.l.b16 %v131
    %v188 = vunpack.c.l.b16 %v132
    %v189 = vpack.c.b16 %v187, %v186
    %v190 = vpack.c.b16 %v188, %v188
    %vm192 = vcmask 162816
    %v194 = vsel %vm192, %v110, 0
    %v197 = vsel %vm192, %v111, 0
    %v200 = vsel %vm192, %v112, 0
    %v203 = vsel %vm192, %v113, 0
    %vm205 = vcmask 1041408
    %v207 = vsel %vm205, %v190, 0
    %209 = vmatpush.bf16.msra.mxu0 0
    %210 = vmatpush.bf16.msra.mxu0 0
    %211 = vmatpush.bf16.msra.mxu0 0
    %212 = vmatpush.bf16.msra.mxu0 0
    %213 = vmatpush.bf16.msra.mxu0 0
    %214 = vmatpush.bf16.msra.mxu0 0
    %215 = vmatpush.bf16.msra.mxu0 %v207
    %216 = vmatpush.bf16.msra.mxu0 %v189
    %217 = vmatmul.bf16.gmra.mxu0 %v194
    %v218 = vpop.f32.mrf.mxu0
    %v219 = vadd.f32 %v164, %v218
    %v220 = vpop.f32.mrf.mxu0
    %v221 = vadd.f32 %v166, %v220
    %222 = vmatmul.bf16.gmra.mxu0 %v197
    %v223 = vpop.f32.mrf.mxu0
    %v224 = vadd.f32 %v169, %v223
    %v225 = vpop.f32.mrf.mxu0
    %v226 = vadd.f32 %v171, %v225
    %227 = vmatmul.bf16.gmra.mxu0 %v200
    %v228 = vpop.f32.mrf.mxu0
    %v229 = vadd.f32 %v174, %v228
    %v230 = vpop.f32.mrf.mxu0
    %v231 = vadd.f32 %v176, %v230
    %232 = vmatmul.bf16.gmra.mxu0 %v203
    %v233 = vpop.f32.mrf.mxu0
    %v234 = vadd.f32 %v179, %v233
    %v235 = vpop.f32.mrf.mxu0
    %v236 = vadd.f32 %v181, %v235
    %237 = vdwg.mxu0
    %v238 = vperm.slane %v126, 0
    %v239 = vadd.f32 %v219, %v238
    %v240 = vadd.f32 %v221, %v238
    %v241 = vadd.f32 %v224, %v238
    %v242 = vadd.f32 %v226, %v238
    %v243 = vadd.f32 %v229, %v238
    %v244 = vadd.f32 %v231, %v238
    %v245 = vadd.f32 %v234, %v238
    %v246 = vadd.f32 %v236, %v238
    %v247 = vmax.f32 %v239, 0.0
    %v248 = vmax.f32 %v240, 0.0
    %v249 = vmax.f32 %v241, 0.0
    %v250 = vmax.f32 %v242, 0.0
    %v251 = vmax.f32 %v243, 0.0
    %v252 = vmax.f32 %v244, 0.0
    %v253 = vmax.f32 %v245, 0.0
    %v254 = vmax.f32 %v246, 0.0
    %v255 = vpack.c.bf16 %v248, %v247
    %v256 = vpack.c.bf16 %v250, %v249
    %v257 = vpack.c.bf16 %v252, %v251
    %v258 = vpack.c.bf16 %v254, %v253
    %v259 = vld [vmem:[#allocation9] sm:$0xf]
    %v260 = vld [vmem:[#allocation9 + $0x4] sm:$0xf]
    %v261 = vld [vmem:[#allocation9 + $0x8] sm:$0xf]
    %v262 = vld [vmem:[#allocation9 + $0xc] sm:$0xf]
    %v263 = vperm.slane %v127, 0
    %v268 = vunpack.c.l.b16 %v259
    %v269 = vunpack.c.l.b16 %v260
    %v270 = vunpack.c.l.b16 %v261
    %v271 = vunpack.c.l.b16 %v262
    %v272 = vpack.c.b16 %v269, %v268
    %v273 = vpack.c.b16 %v271, %v270
    %vm276 = vcmask 261120
    %v278 = vsel %vm276, %v255, 0
    %v281 = vsel %vm276, %v256, 0
    %v284 = vsel %vm276, %v257, 0
    %v287 = vsel %vm276, %v258, 0
    %289 = vmatpush.bf16.msra.mxu0 0
    %290 = vmatpush.bf16.msra.mxu0 0
    %291 = vmatpush.bf16.msra.mxu0 0
    %292 = vmatpush.bf16.msra.mxu0 0
    %293 = vmatpush.bf16.msra.mxu0 0
    %294 = vmatpush.bf16.msra.mxu0 0
    %295 = vmatpush.bf16.msra.mxu0 %v273
    %296 = vmatpush.bf16.msra.mxu0 %v272
    %297 = vmatmul.bf16.gmra.mxu0 %v278
    %v298 = vpop.f32.mrf.mxu0
    %v299 = vadd.f32 %v263, %v298
    %v300 = vpop.f32.mrf.mxu0
    %v301 = vadd.f32 %v263, %v300
    %302 = vmatmul.bf16.gmra.mxu0 %v281
    %v303 = vpop.f32.mrf.mxu0
    %v304 = vadd.f32 %v263, %v303
    %v305 = vpop.f32.mrf.mxu0
    %v306 = vadd.f32 %v263, %v305
    %307 = vmatmul.bf16.gmra.mxu0 %v284
    %v308 = vpop.f32.mrf.mxu0
    %v309 = vadd.f32 %v263, %v308
    %v310 = vpop.f32.mrf.mxu0
    %v311 = vadd.f32 %v263, %v310
    %312 = vmatmul.bf16.gmra.mxu0 %v287
    %v313 = vpop.f32.mrf.mxu0
    %v314 = vadd.f32 %v263, %v313
    %v315 = vpop.f32.mrf.mxu0
    %v316 = vadd.f32 %v263, %v315
    %317 = vdwg.mxu0
    %v318 = vmax.f32 %v299, 0.0
    %v319 = vmax.f32 %v301, 0.0
    %v320 = vmax.f32 %v304, 0.0
    %v321 = vmax.f32 %v306, 0.0
    %v322 = vmax.f32 %v309, 0.0
    %v323 = vmax.f32 %v311, 0.0
    %v324 = vmax.f32 %v314, 0.0
    %v325 = vmax.f32 %v316, 0.0
    %v326 = vperm.slane %v128, 0
    %v327 = vmul.f32 %v318, %v326
    %v328 = vmul.f32 %v319, %v326
    %v329 = vmul.f32 %v320, %v326
    %v330 = vmul.f32 %v321, %v326
    %v331 = vmul.f32 %v322, %v326
    %v332 = vmul.f32 %v323, %v326
    %v333 = vmul.f32 %v324, %v326
    %v334 = vmul.f32 %v325, %v326
    %v335 = vsel %vm276, %v327, 0.0
    %336 = vadd.xlane.f32.xlu0 %v335
    %v337 = vpop.xlane.xlu0 %336
    %v338 = vsel %vm276, %v328, 0.0
    %339 = vadd.xlane.f32.xlu0 %v338
    %v340 = vpop.xlane.xlu0 %339
    %v341 = vsel %vm276, %v329, 0.0
    %342 = vadd.xlane.f32.xlu0 %v341
    %v343 = vpop.xlane.xlu0 %342
    %v344 = vsel %vm276, %v330, 0.0
    %345 = vadd.xlane.f32.xlu0 %v344
    %v346 = vpop.xlane.xlu0 %345
    %v347 = vsel %vm276, %v331, 0.0
    %348 = vadd.xlane.f32.xlu0 %v347
    %v349 = vpop.xlane.xlu0 %348
    %v350 = vsel %vm276, %v332, 0.0
    %351 = vadd.xlane.f32.xlu0 %v350
    %v352 = vpop.xlane.xlu0 %351
    %v353 = vsel %vm276, %v333, 0.0
    %354 = vadd.xlane.f32.xlu0 %v353
    %v355 = vpop.xlane.xlu0 %354
    %v356 = vsel %vm276, %v334, 0.0
    %357 = vadd.xlane.f32.xlu0 %v356
    %v358 = vpop.xlane.xlu0 %357
    %v359 = vperm.slane %v129, 0
    %v360 = vadd.f32 %v337, %v359
    %v361 = vadd.f32 %v340, %v359
    %v362 = vadd.f32 %v343, %v359
    %v363 = vadd.f32 %v346, %v359
    %v364 = vadd.f32 %v349, %v359
    %v365 = vadd.f32 %v352, %v359
    %v366 = vadd.f32 %v355, %v359
    %v367 = vadd.f32 %v358, %v359
    %vm368 = vcmask 7168
    %369 = vst.msk [vmem:[%s6] sm:$0xff] %vm368, %v360
    %370 = vst.msk [vmem:[%s6 + $0x8] sm:$0xff] %vm368, %v361
    %371 = vst.msk [vmem:[%s6 + $0x10] sm:$0xff] %vm368, %v362
    %372 = vst.msk [vmem:[%s6 + $0x18] sm:$0xff] %vm368, %v363
    %373 = vst.msk [vmem:[%s6 + $0x20] sm:$0xff] %vm368, %v364
    %374 = vst.msk [vmem:[%s6 + $0x28] sm:$0xff] %vm368, %v365
    %375 = vst.msk [vmem:[%s6 + $0x30] sm:$0xff] %vm368, %v366
    %376 = vst.msk [vmem:[%s6 + $0x38] sm:$0xff] %vm368, %v367
    // Predicated region
    $region46: #{fop_critic_forward.1} parent=1 // pred_check
      _
    $region47: #{fop_critic_forward.1} parent=1 // pred_check_branch
      %378 = sbr.rel (0) target = $region49
    $region48: #{fop_critic_forward.1} parent=1 // pred_region
      _
    $region49: #{fop_critic_forward.1} parent=1 // pred_fallthru
      _
    // Predicated region
    $region50: #{fop_critic_forward.1} parent=1 // pred_check
      _
    $region51: #{fop_critic_forward.1} parent=1 // pred_check_branch
      %380 = sbr.rel (0) target = $region53
    $region52: #{fop_critic_forward.1} parent=1 // pred_region
      _
    $region53: #{fop_critic_forward.1} parent=1 // pred_fallthru
      _
    %381 = vsyncpa [#allocation3], 1
    %382 = vsyncpa [#allocation5], 1
    %383 = vsyncpa [#allocation8], 1

</llo_original>
